<compile_context>
chip_gen: v7x
topology: tpu7x:2x2x1
jax: 0.10.0
libtpu: 0.0.40
codegen_flags: <defaults>
</compile_context>

<pallas_src>
import math

import jax
import jax.numpy as jnp
from jax.experimental import pallas as pl
from jax.experimental.pallas import tpu as pltpu

_NHIDDEN = 64  # SPADE mlp_shared hidden width (NowcastNet default)

# pltpu.roll is expected to match jnp.roll (result[i] = x[i - shift]); this is
# verified at runtime by _verify_roll_convention() before the decoder traces.
_ROLL_MATCHES_JNP = True

_COMPILER_PARAMS_CACHE = None


def _compiler_params():
    """Per-generation params: batch sharded over cores, VMEM limit ~3/4 of
    physical (96 MiB on v5e/v6e, 48 MiB on v7x / unknown)."""
    global _COMPILER_PARAMS_CACHE
    if _COMPILER_PARAMS_CACHE is None:
        try:
            cap = int(pltpu.get_tpu_info().vmem_capacity_bytes)
        except Exception:
            cap = 64 * 1024 * 1024                       # v7x-safe fallback
        _COMPILER_PARAMS_CACHE = pltpu.CompilerParams(
            dimension_semantics=("parallel",),
            vmem_limit_bytes=min(cap * 3 // 4, 100 * 1024 * 1024),
        )
    return _COMPILER_PARAMS_CACHE


def _verify_roll_convention():
    """Tiny probe kernel pinning pltpu.roll's direction (guards conv taps)."""
    global _ROLL_MATCHES_JNP

    def k(x_ref, o_ref):
        o_ref[...] = pltpu.roll(x_ref[...], 1, 1)

    x = jnp.broadcast_to(jax.lax.iota(jnp.float32, 128), (8, 128))
    out = pl.pallas_call(k, out_shape=jax.ShapeDtypeStruct((8, 128), jnp.float32))(x)
    _ROLL_MATCHES_JNP = bool(out[0, 0] == 127.0)         # jnp.roll: out[0] == x[-1]


# --------------------------------------------------------------------------
# Fused GenBlock kernel (optionally with fc pre-conv / conv_img post-op)
# --------------------------------------------------------------------------
def run_genblock(x, ev, p, hw, *, double_conv, pre=None, post=None):
    """One fused GenBlock forward.

    x  : (N, Cin_in, H*W) f32 activations (lane-dense flattened spatial).
    ev : (N, evo_ic, H*W) f32, evo already adaptive-avg-pooled to (H, W).
    Returns (N, fout, H*W) f32, or (N, 1, H*W) when `post` is given.
    """
    H, W = hw
    HW = H * W
    N, cin_in, _ = x.shape
    evo_c = ev.shape[1]
    fmid = p["conv_0"]["w"].shape[1]
    fout = p["conv_1"]["w"].shape[1] if double_conv else fmid
    has_shortcut = "conv_s" in p

    names, arrays, specs = [], [], []

    def add(name, arr):
        names.append(name)
        arrays.append(arr)
        specs.append(pl.BlockSpec(arr.shape, lambda n, _nd=arr.ndim: (0,) * _nd))

    def add_spade(tag, sp):
        add(tag + "_sh_w", sp["sh"]["w"]);   add(tag + "_sh_b", sp["sh"]["b"])
        add(tag + "_g_w", sp["gamma"]["w"]); add(tag + "_g_b", sp["gamma"]["b"])
        add(tag + "_b_w", sp["beta"]["w"]);  add(tag + "_b_b", sp["beta"]["b"])

    if pre is not None:
        add("pre_w", pre["w"]); add("pre_b", pre["b"])
    if has_shortcut:
        add_spade("s", p["norm_s"])
        add("cs_w", p["conv_s"]["w"])
    add_spade("n0", p["norm_0"])
    add("c0_w", p["conv_0"]["w"]); add("c0_b", p["conv_0"]["b"])
    if double_conv:
        add_spade("n1", p["norm_1"])
        add("c1_w", p["conv_1"]["w"]); add("c1_b", p["conv_1"]["b"])
    if post is not None:
        add("img_w", post["w"]); add("img_b", post["b"])

    out_c = 1 if post is not None else fout
    out_shape = jax.ShapeDtypeStruct((N, out_c, HW), jnp.float32)
    roll_jnp = _ROLL_MATCHES_JNP

    def kernel(x_ref, ev_ref, *rest):
        refs = dict(zip(names, rest[: len(names)]))
        o_ref = rest[len(names)]

        # ---- tap shift/mask machinery (built once, reused by every conv) ----
        lane = jax.lax.broadcasted_iota(jnp.int32, (1, HW), 1)
        rowi, coli = lane // W, lane % W
        maskf = []
        for t in range(9):
            dy, dx = t // 3 - 1, t % 3 - 1
            if dy == 0 and dx == 0:
                maskf.append(None)
                continue
            m = jnp.ones((1, HW), jnp.float32)
            if dy == -1:
                m = m * (rowi >= 1).astype(jnp.float32)
            if dy == 1:
                m = m * (rowi <= H - 2).astype(jnp.float32)
            if dx == -1:
                m = m * (coli >= 1).astype(jnp.float32)
            if dx == 1:
                m = m * (coli <= W - 2).astype(jnp.float32)
            maskf.append(m)

        def shifted(a, t):
            # result[:, h*W+w] = a[:, (h+dy)*W+(w+dx)], zero outside the image.
            dy, dx = t // 3 - 1, t % 3 - 1
            off = dy * W + dx
            if off == 0:
                return a
            amt = (-off) % HW if roll_jnp else off % HW
            return pltpu.roll(a, amt, 1) * maskf[t]

        def tap_bf16(a, t):
            return shifted(a, t).astype(jnp.bfloat16)

        def conv3x3(a, w_ref, b_ref):
            # a: (Cin, HW) f32 -> (Cout, HW) f32; 9 shifted-tap MXU matmuls.
            cout = w_ref.shape[1]
            acc = jnp.zeros((cout, HW), jnp.float32)
            for t in range(9):
                acc = acc + jnp.dot(w_ref[t], tap_bf16(a, t),
                                    preferred_element_type=jnp.float32)
            return acc + b_ref[...]

        def lrelu(a):
            return jnp.maximum(a, 0.2 * a)

        # evo taps are shared by every SPADE mlp_shared conv in this block.
        ev_taps = [tap_bf16(ev_ref[...], t) for t in range(9)]

        def spade(a, tag):
            c = a.shape[0]
            sh_w, sh_b = refs[tag + "_sh_w"], refs[tag + "_sh_b"]
            g_w, g_b = refs[tag + "_g_w"], refs[tag + "_g_b"]
            b_w, b_b = refs[tag + "_b_w"], refs[tag + "_b_b"]
            # mlp_shared: conv3x3(evo) + ReLU (reuses the precomputed evo taps)
            acc = jnp.zeros((sh_w.shape[1], HW), jnp.float32)
            for t in range(9):
                acc = acc + jnp.dot(sh_w[t], ev_taps[t],
                                    preferred_element_type=jnp.float32)
            actv = jnp.maximum(acc + sh_b[...], 0.0)
            # gamma / beta convs share the shifted-tap prep of actv.
            gamma = jnp.zeros((c, HW), jnp.float32)
            beta = jnp.zeros((c, HW), jnp.float32)
            for t in range(9):
                at = tap_bf16(actv, t)
                gamma = gamma + jnp.dot(g_w[t], at, preferred_element_type=jnp.float32)
                beta = beta + jnp.dot(b_w[t], at, preferred_element_type=jnp.float32)
            gamma = gamma + g_b[...]
            beta = beta + b_b[...]
            # InstanceNorm(affine=False), single-pass statistics.
            m = jnp.mean(a, axis=1, keepdims=True)
            ms = jnp.mean(a * a, axis=1, keepdims=True)
            y = (a - m) * jax.lax.rsqrt(ms - m * m + 1e-5)
            return y * (1.0 + gamma) + beta

        xx = x_ref[...]
        if pre is not None:                               # fused fc conv
            xx = conv3x3(xx, refs["pre_w"], refs["pre_b"])

        if has_shortcut:                                  # shortcut branch
            s = lrelu(spade(xx, "s")).astype(jnp.bfloat16)
            xs = jnp.dot(refs["cs_w"][...], s, preferred_element_type=jnp.float32)
        else:
            xs = xx

        d = lrelu(spade(xx, "n0"))                        # main branch
        d = conv3x3(d, refs["c0_w"], refs["c0_b"])
        if double_conv:
            d = lrelu(spade(d, "n1"))
            d = conv3x3(d, refs["c1_w"], refs["c1_b"])

        out = xs + d                                      # (fout, HW)

        if post is None:
            o_ref[...] = out
        else:
            # fused leaky_relu + conv_img: one MXU matmul to 9 tap planes, then
            # 9 shifted single-row adds (no cross-lane channel reduce).
            y = lrelu(out).astype(jnp.bfloat16)
            z = jnp.dot(refs["img_w"][...], y, preferred_element_type=jnp.float32)
            acc = z[4:5, :]                               # centre tap
            for t in range(9):
                if t == 4:
                    continue
                acc = acc + shifted(z[t:t + 1, :], t)
            o_ref[...] = acc + refs["img_b"][...]

    return pl.pallas_call(
        kernel,
        out_shape=out_shape,
        grid=(N,),
        in_specs=[
            pl.BlockSpec((None, cin_in, HW), lambda n: (n, 0, 0)),
            pl.BlockSpec((None, evo_c, HW), lambda n: (n, 0, 0)),
        ] + specs,
        out_specs=pl.BlockSpec((None, out_c, HW), lambda n: (n, 0, 0)),
        compiler_params=_compiler_params(),
    )(x, ev, *arrays)


# --------------------------------------------------------------------------
# Glue (plain JAX): upsample / adaptive pool / module composition
# --------------------------------------------------------------------------
def upsample2(x, H, W):
    # nn.Upsample(scale_factor=2), default mode='nearest', on (N, C, H*W).
    N, C, _ = x.shape
    x = x.reshape(N, C, H, W)
    x = jnp.repeat(jnp.repeat(x, 2, axis=2), 2, axis=3)
    return x.reshape(N, C, 4 * H * W)


def adaptive_avg_pool(evo, h, w):
    N, C, eH, eW = evo.shape
    fh, fw = eH // h, eW // w
    if fh == 1 and fw == 1:
        return evo
    return evo.reshape(N, C, h, fh, w, fw).mean(axis=(3, 5))


def generative_decoder(params, x_nchw, evo_nchw):
    N, ic, H, W = x_nchw.shape
    x = x_nchw.astype(jnp.float32).reshape(N, ic, H * W)
    evo = evo_nchw.astype(jnp.float32)
    evo_c = evo.shape[1]

    ev_cache = {}

    def ev_at(h, w):          # pool evo once per distinct spatial size, reuse
        if (h, w) not in ev_cache:
            ev_cache[(h, w)] = adaptive_avg_pool(evo, h, w).reshape(N, evo_c, h * w)
        return ev_cache[(h, w)]

    # fc fused into head_0 (pre); leaky_relu + conv_img fused into up_2 (post).
    x = run_genblock(x, ev_at(H, W), params["head_0"], (H, W),
                     double_conv=False, pre=params["fc"])
    x = upsample2(x, H, W); H, W = 2 * H, 2 * W
    x = run_genblock(x, ev_at(H, W), params["G_middle_0"], (H, W), double_conv=True)
    x = run_genblock(x, ev_at(H, W), params["G_middle_1"], (H, W), double_conv=True)
    x = upsample2(x, H, W); H, W = 2 * H, 2 * W
    x = run_genblock(x, ev_at(H, W), params["up_0"], (H, W), double_conv=False)
    x = upsample2(x, H, W); H, W = 2 * H, 2 * W
    x = run_genblock(x, ev_at(H, W), params["up_1"], (H, W), double_conv=True)
    x = run_genblock(x, ev_at(H, W), params["up_2"], (H, W), double_conv=True,
                     post=params["conv_img"])             # (N, 1, H*W)
    return x.reshape(N, 1, H, W)                          # NCHW via free reshape


# --------------------------------------------------------------------------
# Deterministic synthetic parameter init.
#   3x3 conv weights are tap-major (9, Cout, Cin) bf16 with
#   w[t, o, i] == torch_w[o, i, t // 3, t % 3]; biases are (Cout, 1) f32.
#   conv_s (1x1, no bias) is (Cout, Cin) bf16; conv_img is (9, Cin) bf16.
# --------------------------------------------------------------------------
def init_conv3(key, cin, cout):
    kw, kb = jax.random.split(key)
    w = (jax.random.normal(kw, (9, cout, cin), jnp.float32)
         / math.sqrt(9 * cin)).astype(jnp.bfloat16)
    b = jax.random.normal(kb, (cout, 1), jnp.float32) * 0.01
    return {"w": w, "b": b}


def init_conv1(key, cin, cout):
    w = (jax.random.normal(key, (cout, cin), jnp.float32)
         / math.sqrt(cin)).astype(jnp.bfloat16)
    return {"w": w}


def init_spade(key, norm_nc, label_nc, nhidden=_NHIDDEN):
    k1, k2, k3 = jax.random.split(key, 3)
    return {"sh": init_conv3(k1, label_nc, nhidden),
            "gamma": init_conv3(k2, nhidden, norm_nc),
            "beta": init_conv3(k3, nhidden, norm_nc)}


def init_genblock(key, fin, fout, evo_ic):
    fmid = min(fin, fout)
    ks = jax.random.split(key, 6)
    p = {"conv_0": init_conv3(ks[0], fin, fmid),
         "conv_1": init_conv3(ks[1], fmid, fout),
         "norm_0": init_spade(ks[2], fin, evo_ic),
         "norm_1": init_spade(ks[3], fmid, evo_ic)}
    if fin != fout:
        p["conv_s"] = init_conv1(ks[4], fin, fout)
        p["norm_s"] = init_spade(ks[5], fin, evo_ic)
    return p


def init_img_conv(key, cin):
    kw, kb = jax.random.split(key)
    w = (jax.random.normal(kw, (9, cin), jnp.float32)
         / math.sqrt(9 * cin)).astype(jnp.bfloat16)
    b = jax.random.normal(kb, (1, 1), jnp.float32) * 0.01
    return {"w": w, "b": b}


def init_decoder(key, nf, ic, gen_oc, evo_ic):
    # TODO(synk): fused conv_img path supports gen_oc == 1 (NowcastNet default).
    assert gen_oc == 1
    ks = jax.random.split(key, 8)
    return {
        "fc": init_conv3(ks[0], ic, 8 * nf),
        "head_0": init_genblock(ks[1], 8 * nf, 8 * nf, evo_ic),
        "G_middle_0": init_genblock(ks[2], 8 * nf, 4 * nf, evo_ic),
        "G_middle_1": init_genblock(ks[3], 4 * nf, 4 * nf, evo_ic),
        "up_0": init_genblock(ks[4], 4 * nf, 2 * nf, evo_ic),
        "up_1": init_genblock(ks[5], 2 * nf, 1 * nf, evo_ic),
        "up_2": init_genblock(ks[6], 1 * nf, 1 * nf, evo_ic),
        "conv_img": init_img_conv(ks[7], 1 * nf),
    }


# --------------------------------------------------------------------------
# Pure-JAX reference (NCHW, f32, lax.conv) used only for the numeric check.
# --------------------------------------------------------------------------
_HI = jax.lax.Precision.HIGHEST


def _conv3x3_ref(x, w, b):
    cout, cin = w.shape[1], w.shape[2]
    w_oihw = jnp.transpose(w.astype(jnp.float32).reshape(3, 3, cout, cin), (2, 3, 0, 1))
    y = jax.lax.conv_general_dilated(x, w_oihw, (1, 1), ((1, 1), (1, 1)),
                                     dimension_numbers=("NCHW", "OIHW", "NCHW"),
                                     precision=_HI)
    return y + b.reshape(1, cout, 1, 1)


def _lrelu_ref(a):
    return jnp.maximum(a, 0.2 * a)


def _spade_ref(x, ev, sp):
    actv = jax.nn.relu(_conv3x3_ref(ev, sp["sh"]["w"], sp["sh"]["b"]))
    gamma = _conv3x3_ref(actv, sp["gamma"]["w"], sp["gamma"]["b"])
    beta = _conv3x3_ref(actv, sp["beta"]["w"], sp["beta"]["b"])
    m = jnp.mean(x, axis=(2, 3), keepdims=True)
    v = jnp.mean(jnp.square(x - m), axis=(2, 3), keepdims=True)
    return (x - m) / jnp.sqrt(v + 1e-5) * (1.0 + gamma) + beta


def _genblock_ref(x, ev, p, double_conv):
    if "conv_s" in p:
        s = _lrelu_ref(_spade_ref(x, ev, p["norm_s"]))
        xs = jnp.einsum("oi,nihw->nohw", p["conv_s"]["w"].astype(jnp.float32), s,
                        precision=_HI)
    else:
        xs = x
    d = _lrelu_ref(_spade_ref(x, ev, p["norm_0"]))
    d = _conv3x3_ref(d, p["conv_0"]["w"], p["conv_0"]["b"])
    if double_conv:
        d = _lrelu_ref(_spade_ref(d, ev, p["norm_1"]))
        d = _conv3x3_ref(d, p["conv_1"]["w"], p["conv_1"]["b"])
    return xs + d


def _pool_ref(evo, h, w):
    N, C, eH, eW = evo.shape
    return evo.reshape(N, C, h, eH // h, w, eW // w).mean(axis=(3, 5))


def _upsample2_ref(x):
    return jnp.repeat(jnp.repeat(x, 2, axis=2), 2, axis=3)


def generative_decoder_ref(params, x, evo):
    x = x.astype(jnp.float32)
    evo = evo.astype(jnp.float32)
    H, W = x.shape[2], x.shape[3]
    x = _conv3x3_ref(x, params["fc"]["w"], params["fc"]["b"])
    x = _genblock_ref(x, _pool_ref(evo, H, W), params["head_0"], False)
    x = _upsample2_ref(x); H, W = 2 * H, 2 * W
    x = _genblock_ref(x, _pool_ref(evo, H, W), params["G_middle_0"], True)
    x = _genblock_ref(x, _pool_ref(evo, H, W), params["G_middle_1"], True)
    x = _upsample2_ref(x); H, W = 2 * H, 2 * W
    x = _genblock_ref(x, _pool_ref(evo, H, W), params["up_0"], False)
    x = _upsample2_ref(x); H, W = 2 * H, 2 * W
    x = _genblock_ref(x, _pool_ref(evo, H, W), params["up_1"], True)
    x = _genblock_ref(x, _pool_ref(evo, H, W), params["up_2"], True)
    w_img = params["conv_img"]["w"].astype(jnp.float32)        # (9, fin)
    fin = w_img.shape[1]
    w_oihw = jnp.transpose(w_img.reshape(3, 3, fin), (2, 0, 1))[None]
    y = jax.lax.conv_general_dilated(_lrelu_ref(x), w_oihw, (1, 1), ((1, 1), (1, 1)),
                                     dimension_numbers=("NCHW", "OIHW", "NCHW"),
                                     precision=_HI)
    return y + params["conv_img"]["b"].reshape(1, 1, 1, 1)


# --------------------------------------------------------------------------
if __name__ == "__main__":
    nf, ic, gen_oc, evo_ic = 4, 6, 1, 2
    N, S = 2, 16                     # x spatial 16x16; evo / output 128x128

    _verify_roll_convention()        # pin pltpu.roll direction before tracing

    key = jax.random.PRNGKey(0)
    kp, kx, ke = jax.random.split(key, 3)
    params = init_decoder(kp, nf, ic, gen_oc, evo_ic)

    x = jax.random.normal(kx, (N, ic, S, S), jnp.float32)             # NCHW
    evo = jax.random.normal(ke, (N, evo_ic, 8 * S, 8 * S), jnp.float32)

    out = jax.block_until_ready(jax.jit(generative_decoder)(params, x, evo))
    assert out.shape == (N, gen_oc, 8 * S, 8 * S), out.shape
    assert bool(jnp.all(jnp.isfinite(out)))

    # Numerical check against a pure-JAX (f32, lax.conv) reference.
    ref = jax.block_until_ready(jax.jit(generative_decoder_ref)(params, x, evo))
    rel = float(jnp.sqrt(jnp.sum((out - ref) ** 2) / (jnp.sum(ref ** 2) + 1e-12)))
    assert rel < 8e-2, f"relative L2 error vs reference: {rel:.4f}"

    print("KERNEL_OK")
</pallas_src>

<mosaic_0001>
module attributes {stable_mosaic.version = 11 : i64} {
  func.func @k(%arg0: memref<8x128xf32, #tpu.memory_space<vmem>>, %arg1: memref<8x128xf32, #tpu.memory_space<vmem>>) attributes {dimension_semantics = [], scalar_prefetch = 0 : i64, scratch_operands = 0 : i64, tpu.core_type = #tpu.core_type<tc>} {
    %c0 = arith.constant 0 : index
    %c0_0 = arith.constant 0 : index
    %0 = vector.load %arg0[%c0, %c0_0] : memref<8x128xf32, #tpu.memory_space<vmem>>, vector<8x128xf32>
    %c1_i32 = arith.constant 1 : i32
    %1 = tpu.dynamic_rotate %0 by %c1_i32 dim 1 : vector<8x128xf32>, i32 -> vector<8x128xf32>
    %c0_1 = arith.constant 0 : index
    %c0_2 = arith.constant 0 : index
    %2 = vector.load %arg1[%c0_1, %c0_2] : memref<8x128xf32, #tpu.memory_space<vmem>>, vector<8x128xf32>
    tpu.vector_store %arg1[%c0_1, %c0_2], %1 {strides = array<i32>} : memref<8x128xf32, #tpu.memory_space<vmem>>, vector<8x128xf32>,
    return
  }
}

</mosaic_0001>

<llo_original>
// kernel: tpu_custom_call.1
$region0: #{tpu_custom_call.1}
  #allocation0 [shape = 'u32[]', space=smem, size = 0x4, offset = 0x4, fixed_abs, tag = 'smem constant byte address 0x4 - core index']
  #allocation1 [shape = 'u32[144,128]{1,0:T(1,128)}', space=vmem, size = 0x12000, scoped, tag = 'internal scratch']
  %s0 = inlined_call_operand.hbm [shape: f32[8,128], index: 0, kind: input, shape index: {}]
  %s1 = inlined_call_operand.hbm [shape: f32[8,128], index: 1, kind: output, shape index: {}]
  %s2 = sld [smem:[#allocation0]]
  $region18: #{tpu_custom_call.1} parent=0
    _
  %s4 = ssub.s32 1, %s2
  %s5 = scalar_select 0, %s4, %s2
  $region1: #{tpu_custom_call.1} parent=0
    #allocation2 [shape = 'u8[4096]{0}', space=vmem, size = 0x1000, scoped, tag = 'input window, operand 0, single buffered']
    #allocation3 [shape = 's32[1]{0}', space=sflag, size = 0x4, scoped, tag = 'scoped memory for tpu_custom_call.1']
    #allocation4 [shape = 's32[1]{0}', space=sflag, size = 0x4, scoped, tag = 'scoped memory for tpu_custom_call.1']
    #allocation5 [shape = 'u8[4096]{0}', space=vmem, size = 0x1000, scoped, tag = 'output window, operand 0, single buffered']
    %6 = vsyncpa [#allocation3], 0
    %7 = vsyncpa [#allocation4], 0
    // Predicated region
    $region2: #{tpu_custom_call.1} parent=1 // pred_check
      _
    $region3: #{tpu_custom_call.1} parent=1 // pred_check_branch
      %9 = sbr.rel (0) target = $region5
    $region4: #{tpu_custom_call.1} parent=1 // pred_region
      %s11 = ssub.s32 128, 128
      %12 = vsyncadd [#allocation3], %s11
      %s14 = sshll.u32 [#allocation2], 4
      %s15 = int_to_ptr.vmem [resolvable:$true] %s14
      %17 = dma.hbm_to_vmem [thread:$0]  %s0, 128, %s15, [#allocation3]
    $region5: #{tpu_custom_call.1} parent=1 // pred_fallthru
      _
    // Predicated region
    $region6: #{tpu_custom_call.1} parent=1 // pred_check
      _
    $region7: #{tpu_custom_call.1} parent=1 // pred_check_branch
      %19 = sbr.rel (0) target = $region9
    $region8: #{tpu_custom_call.1} parent=1 // pred_region
      %20 = dma.done [#allocation3], 128
    $region9: #{tpu_custom_call.1} parent=1 // pred_fallthru
      _
    %v21 = vld [vmem:[#allocation2] sm:$0xff]
    %22 = vrot.lane.b32.xlu0 %v21, 1
    %v23 = vpop.permute.xlu0 %22
    %24 = vst [vmem:[#allocation5] sm:$0xff] %v23
    // Predicated region
    $region10: #{tpu_custom_call.1} parent=1 // pred_check
      _
    $region11: #{tpu_custom_call.1} parent=1 // pred_check_branch
      %26 = sbr.rel (0) target = $region13
    $region12: #{tpu_custom_call.1} parent=1 // pred_region
      %s28 = ssub.s32 128, 128
      %29 = vsyncadd [#allocation4], %s28
      %s31 = sshll.u32 [#allocation5], 4
      %s32 = int_to_ptr.vmem [resolvable:$true] %s31
      %34 = dma.vmem_to_hbm [thread:$0]  %s32, 128, %s1, [#allocation4]
    $region13: #{tpu_custom_call.1} parent=1 // pred_fallthru
      _
    // Predicated region
    $region14: #{tpu_custom_call.1} parent=1 // pred_check
      _
    $region15: #{tpu_custom_call.1} parent=1 // pred_check_branch
      %36 = sbr.rel (0) target = $region17
    $region16: #{tpu_custom_call.1} parent=1 // pred_region
      %37 = dma.done [#allocation4], 128
    $region17: #{tpu_custom_call.1} parent=1 // pred_fallthru
      _
    %38 = vsyncpa [#allocation3], 1
    %39 = vsyncpa [#allocation4], 1

</llo_original>
